<compile_context>
chip_gen: v5e
topology: v5e:2x2
jax: 0.10.0
libtpu: 0.0.40
codegen_flags: <defaults>
</compile_context>

<pallas_src>
import jax
import jax.numpy as jnp
import numpy as np
from jax.experimental import pallas as pl
from jax.experimental.pallas import tpu as pltpu


def _identity_copy_kernel(x_ref, o_ref):
    # Pure identity on the current lane-dense VMEM tile.
    o_ref[...] = x_ref[...]


_LANE_CANDIDATES = (8192, 4096, 2048, 1024, 512, 256, 128)


def _lane_dense_layout(n, t, c):
    """Pick a reshape-only (rows, cols) 2D view of (n, t, c).  Never pads."""
    total = n * t * c
    # Prefer a fully flattened lane-dense view (cols a multiple of 128) that
    # still leaves >= 8 rows, so full (8, 128) vregs are occupied and stores
    # are unmasked `vst`.
    for cols in _LANE_CANDIDATES:
        if total % cols == 0 and total // cols >= 8:
            return total // cols, cols
    # Fallback: no jnp.pad / slice copies.  Use the (n, t*c) view; the block
    # covers the full trailing dim, so the (8, 128) divisibility rule does
    # not apply, and t*c is lane-denser than c alone.
    return n, t * c


def _tile_bytes_and_vmem_limit():
    """Generation-aware tile sizing.

    v7x has only 64 MiB VMEM/TC -> cap per-tile at 4 MiB (in + out, double
    buffered = 16 MiB, well under a 32 MiB scoped budget).  v5e/v6e have
    128 MiB -> 8 MiB tiles with a 64 MiB budget.
    """
    try:
        vmem_capacity = pltpu.get_tpu_info().vmem_capacity_bytes
    except Exception:
        vmem_capacity = 64 << 20  # be conservative if the query fails
    if vmem_capacity >= (128 << 20):
        return 8 << 20, 64 << 20
    return 4 << 20, 32 << 20


def pallas_identity_copy(waveforms):
    """Materialize a copy of `waveforms` via a lane-dense Pallas TPU kernel.

    NOT used on the Passthrough hot path (identity needs no HBM traffic);
    retained for callers that explicitly want a fresh / donated buffer.
    """
    n, t, c = waveforms.shape
    total = n * t * c
    if total == 0:
        # Empty spike batches are common in dartsort; nothing to copy.
        return waveforms

    itemsize = jnp.dtype(waveforms.dtype).itemsize
    rows, cols = _lane_dense_layout(n, t, c)
    x2d = waveforms.reshape(rows, cols)  # contiguous reshape: free, no copy

    tile_bytes, vmem_limit = _tile_bytes_and_vmem_limit()
    block_rows = max(8, (tile_bytes // (cols * itemsize)) // 8 * 8)
    if block_rows >= rows:
        # Block equals the full array extent on this axis -> always legal.
        block_rows = rows
    grid = (pl.cdiv(rows, block_rows),)

    out2d = pl.pallas_call(
        _identity_copy_kernel,
        out_shape=jax.ShapeDtypeStruct((rows, cols), waveforms.dtype),
        grid=grid,
        in_specs=[pl.BlockSpec((block_rows, cols), lambda i: (i, 0))],
        out_specs=pl.BlockSpec((block_rows, cols), lambda i: (i, 0)),
        # Reuse the input HBM pages for the output (effective under jit with
        # buffer donation); halves peak HBM footprint for large spike batches.
        input_output_aliases={0: 0},
        compiler_params=pltpu.CompilerParams(
            # TODO(synk): on v7x, CORE_PARALLEL would shard the copy across
            # both TensorCores; kept as "parallel" for portability since this
            # kernel is off the pipeline=None hot path.
            dimension_semantics=("parallel",),
            vmem_limit_bytes=vmem_limit,
        ),
    )(x2d)

    return out2d.reshape(n, t, c)


def passthrough_forward(waveforms, max_channels=None):
    """Passthrough.forward with pipeline=None: returns (waveforms, {}).

    JAX arrays are immutable, so the identity path needs zero HBM traffic —
    return the input directly instead of running a copy kernel.
    """
    # TODO(synk): with a non-None pipeline, pipeline features would be
    # computed here; there is no pipeline in this synthetic setup.
    return waveforms, {}


def passthrough_transform(waveforms, max_channels=None):
    """Passthrough.transform with pipeline=None returns {}."""
    return {}


if __name__ == "__main__":
    key = jax.random.PRNGKey(0)
    # small waveform batch: 8 spikes, 16 time samples, 16 channels
    waveforms = jax.random.normal(key, (8, 16, 16), dtype=jnp.float32)
    max_channels = jnp.zeros((8,), dtype=jnp.int32)
    expected = np.asarray(waveforms)

    # --- hot path: pure identity, no kernel, no copies -----------------
    out_waveforms, features = passthrough_forward(waveforms, max_channels)
    out_waveforms = jax.block_until_ready(out_waveforms)
    assert out_waveforms.shape == waveforms.shape
    assert out_waveforms.dtype == waveforms.dtype
    assert features == {}
    assert np.array_equal(np.asarray(out_waveforms), expected)

    feats = passthrough_transform(waveforms, max_channels)
    assert feats == {}

    # --- explicit-copy path: exercise the Pallas kernel -----------------
    copied = jax.block_until_ready(pallas_identity_copy(waveforms))
    assert copied.shape == waveforms.shape
    assert copied.dtype == waveforms.dtype
    assert np.array_equal(np.asarray(copied), expected)

    # ragged shape (no lane candidate divides total): no-pad fallback path
    ragged = jax.random.normal(jax.random.PRNGKey(1), (5, 7, 3), jnp.float32)
    ragged_copy = jax.block_until_ready(pallas_identity_copy(ragged))
    assert np.array_equal(np.asarray(ragged_copy), np.asarray(ragged))

    # empty spike batch: must not divide by zero / launch anything
    empty = jnp.zeros((0, 16, 16), dtype=jnp.float32)
    empty_out, empty_feats = passthrough_forward(empty)
    assert empty_out.shape == (0, 16, 16) and empty_feats == {}
    assert pallas_identity_copy(empty).shape == (0, 16, 16)

    print("KERNEL_OK")
</pallas_src>

<mosaic_0001>
module attributes {stable_mosaic.version = 11 : i64} {
  func.func @_identity_copy_kernel(%arg0: i32, %arg1: memref<8x256xf32, #tpu.memory_space<vmem>>, %arg2: memref<8x256xf32, #tpu.memory_space<vmem>>) attributes {dimension_semantics = [#tpu.dimension_semantics<parallel>], iteration_bounds = array<i64: 1>, scalar_prefetch = 0 : i64, scratch_operands = 0 : i64, tpu.core_type = #tpu.core_type<tc>, window_params = [{transform_indices = @transform_0, window_bounds = array<i64: 8, 256>}, {transform_indices = @transform_1, window_bounds = array<i64: 8, 256>}]} {
    %c0 = arith.constant 0 : index
    %c0_0 = arith.constant 0 : index
    %0 = vector.load %arg1[%c0, %c0_0] : memref<8x256xf32, #tpu.memory_space<vmem>>, vector<8x256xf32>
    %c0_1 = arith.constant 0 : index
    %c0_2 = arith.constant 0 : index
    %1 = vector.load %arg2[%c0_1, %c0_2] : memref<8x256xf32, #tpu.memory_space<vmem>>, vector<8x256xf32>
    tpu.vector_store %arg2[%c0_1, %c0_2], %0 {strides = array<i32>} : memref<8x256xf32, #tpu.memory_space<vmem>>, vector<8x256xf32>,
    return
  }
  func.func @transform_0(%arg0: i32) -> (i32, i32) {
    %c0_i32 = arith.constant 0 : i32
    %c0_i32_0 = arith.constant 0 : i32
    return %arg0, %c0_i32 : i32, i32
  }
  func.func @transform_1(%arg0: i32) -> (i32, i32) {
    %c0_i32 = arith.constant 0 : i32
    %c0_i32_0 = arith.constant 0 : i32
    return %arg0, %c0_i32 : i32, i32
  }
}

</mosaic_0001>

<llo_original>
// kernel: tpu_custom_call.1
$region0: #{tpu_custom_call.1}
  #allocation0 [shape = 'u32[]', space=smem, size = 0x4, offset = 0x4, fixed_abs, tag = 'smem constant byte address 0x4 - core index']
  #allocation1 [shape = 'u32[72,128]{1,0:T(1,128)}', space=vmem, size = 0x9000, scoped, tag = 'internal scratch']
  %s0 = inlined_call_operand.hbm [shape: f32[8,256], index: 0, kind: input, shape index: {}, may-alias: {0,1}]
  %s1 = inlined_call_operand.hbm [shape: f32[8,256], index: 1, kind: output, shape index: {}, may-alias: {0,1}]
  %s2 = sld [smem:[#allocation0]]
  $region18: #{tpu_custom_call.1} parent=0
    _
  %s4 = ssub.s32 1, %s2
  %s5 = scalar_select 0, %s4, %s2
  $region1: #{tpu_custom_call.1} parent=0
    #allocation2 [shape = 'u8[8192]{0}', space=vmem, size = 0x2000, scoped, tag = 'input window, operand 0, single buffered']
    #allocation3 [shape = 's32[1]{0}', space=sflag, size = 0x4, scoped, tag = 'scoped memory for tpu_custom_call.1']
    #allocation4 [shape = 's32[1]{0}', space=sflag, size = 0x4, scoped, tag = 'scoped memory for tpu_custom_call.1']
    #allocation5 [shape = 'u8[8192]{0}', space=vmem, size = 0x2000, scoped, tag = 'output window, operand 0, single buffered']
    %6 = vsyncpa [#allocation3], 0
    %7 = vsyncpa [#allocation4], 0
    // Predicated region
    $region2: #{tpu_custom_call.1} parent=1 // pred_check
      _
    $region3: #{tpu_custom_call.1} parent=1 // pred_check_branch
      %9 = sbr.rel (0) target = $region5
    $region4: #{tpu_custom_call.1} parent=1 // pred_region
      %11 = vsyncadd [#allocation3], 0
      %s13 = sshll.u32 %s0, 4
      %s14 = int_to_ptr.hbm [resolvable:$true] %s13
      %s15 = sshll.u32 [#allocation2], 4
      %s16 = int_to_ptr.vmem [resolvable:$true] %s15
      %18 = dma.hbm_to_vmem [thread:$0]  %s14, 256, %s16, [#allocation3]
    $region5: #{tpu_custom_call.1} parent=1 // pred_fallthru
      _
    // Predicated region
    $region6: #{tpu_custom_call.1} parent=1 // pred_check
      _
    $region7: #{tpu_custom_call.1} parent=1 // pred_check_branch
      %20 = sbr.rel (0) target = $region9
    $region8: #{tpu_custom_call.1} parent=1 // pred_region
      %22 = dma.done [#allocation3], 256
    $region9: #{tpu_custom_call.1} parent=1 // pred_fallthru
      _
    %v23 = vld [vmem:[#allocation2] sm:$0xff]
    %v24 = vld [vmem:[#allocation2 + $0x8] sm:$0xff]
    %25 = vst [vmem:[#allocation5] sm:$0xff] %v23
    %26 = vst [vmem:[#allocation5 + $0x8] sm:$0xff] %v24
    // Predicated region
    $region10: #{tpu_custom_call.1} parent=1 // pred_check
      _
    $region11: #{tpu_custom_call.1} parent=1 // pred_check_branch
      %28 = sbr.rel (0) target = $region13
    $region12: #{tpu_custom_call.1} parent=1 // pred_region
      %30 = vsyncadd [#allocation4], 0
      %s32 = sshll.u32 [#allocation5], 4
      %s33 = int_to_ptr.vmem [resolvable:$true] %s32
      %s34 = sshll.u32 %s1, 4
      %s35 = int_to_ptr.hbm [resolvable:$true] %s34
      %37 = dma.vmem_to_hbm [thread:$0]  %s33, 256, %s35, [#allocation4]
    $region13: #{tpu_custom_call.1} parent=1 // pred_fallthru
      _
    // Predicated region
    $region14: #{tpu_custom_call.1} parent=1 // pred_check
      _
    $region15: #{tpu_custom_call.1} parent=1 // pred_check_branch
      %39 = sbr.rel (0) target = $region17
    $region16: #{tpu_custom_call.1} parent=1 // pred_region
      %41 = dma.done [#allocation4], 256
    $region17: #{tpu_custom_call.1} parent=1 // pred_fallthru
      _
    %42 = vsyncpa [#allocation3], 1
    %43 = vsyncpa [#allocation4], 1

</llo_original>
